<compile_context>
chip_gen: v5e
topology: v5e:2x2
jax: 0.10.0
libtpu: 0.0.40
codegen_flags: <defaults>
</compile_context>

<pallas_src>
import jax
import jax.numpy as jnp
from jax.experimental import pallas as pl
from jax.experimental.pallas import tpu as pltpu


def tetra_kernel(x_ref, w1t_ref, w2t_ref, vecs_ref, o_ref):
    # x_ref: (4, N, H) -- four clean (N, H) neighbour tiles.
    n0 = x_ref[0]
    n1 = x_ref[1]
    n2 = x_ref[2]
    n3 = x_ref[3]

    # Product over the 6 pairwise differences (i < j).
    m = (n0 - n1) * (n0 - n2) * (n0 - n3) * (n1 - n2) * (n1 - n3) * (n2 - n3)

    # Signed 6th root: sign(m) * (|m| + 1e-6) ** (1/6).
    # exp/log run on the EUP; selects replace sign()'s compares+multiply and
    # keep the exact torch.sign(0) == 0 behaviour.
    r = jnp.exp(jnp.log(jnp.abs(m) + 1e-6) * (1.0 / 6.0))
    t = jnp.where(m == 0.0, 0.0, jnp.where(m >= 0.0, r, -r))

    # Packed per-feature vectors: rows = [b1, gamma, beta, b2], each (1, H).
    b1 = vecs_ref[0:1, :]
    gamma = vecs_ref[1:2, :]
    beta = vecs_ref[2:3, :]
    b2 = vecs_ref[3:4, :]

    # Linear 1 (weights pre-transposed in the wrapper: y = t @ W1.T + b1).
    h = jnp.dot(t, w1t_ref[...], preferred_element_type=jnp.float32) + b1

    # BatchNorm1d, training-mode batch statistics (biased variance), eps=1e-5.
    mean = jnp.mean(h, axis=0, keepdims=True)
    var = jnp.mean((h - mean) ** 2, axis=0, keepdims=True)
    h = (h - mean) * jax.lax.rsqrt(var + 1e-5) * gamma + beta

    # ReLU
    h = jnp.maximum(h, 0.0)

    # Linear 2
    out = jnp.dot(h, w2t_ref[...], preferred_element_type=jnp.float32) + b2
    o_ref[...] = out.astype(o_ref.dtype)


def tetra_differences_product(x, params):
    """x: (N, 4, H) float32; params = (w1, b1, gamma, beta, w2, b2) in PyTorch layout."""
    N, four, H = x.shape
    assert four == 4
    w1, b1, gamma, beta, w2, b2 = params

    # Layout plumbing (done once, outside the kernel):
    x4 = jnp.transpose(x, (1, 0, 2))              # (4, N, H): lane-dense neighbour tiles
    w1t = jnp.transpose(w1)                       # (H, H): kernel computes t @ w1t
    w2t = jnp.transpose(w2)
    vecs = jnp.stack([b1, gamma, beta, b2], 0)    # (4, H): single DMA for all vectors

    vmem = lambda: pl.BlockSpec(memory_space=pltpu.MemorySpace.VMEM)

    return pl.pallas_call(
        tetra_kernel,
        out_shape=jax.ShapeDtypeStruct((N, H), x.dtype),
        in_specs=[vmem(), vmem(), vmem(), vmem()],
        out_specs=vmem(),
    )(x4, w1t, w2t, vecs)


def _reference_forward(x, params):
    """Pure-JAX reference mirroring the PyTorch module (train-mode BatchNorm)."""
    w1, b1, gamma, beta, w2, b2 = params
    nbs = [x[:, i, :] for i in range(4)]
    m = jnp.ones_like(nbs[0])
    for i in range(4):
        for j in range(i + 1, 4):
            m = m * (nbs[i] - nbs[j])
    t = jnp.sign(m) * jnp.power(jnp.abs(m) + 1e-6, 1.0 / 6.0)
    h = t @ w1.T + b1
    mean = jnp.mean(h, axis=0, keepdims=True)
    var = jnp.mean((h - mean) ** 2, axis=0, keepdims=True)
    h = (h - mean) * jax.lax.rsqrt(var + 1e-5) * gamma + beta
    h = jnp.maximum(h, 0.0)
    return h @ w2.T + b2


if __name__ == "__main__":
    N, H = 16, 128  # small batch, hidden = 128 (lane-aligned)
    key = jax.random.PRNGKey(0)
    kx, k1, k2, k3, k4 = jax.random.split(key, 5)

    x = jax.random.normal(kx, (N, 4, H), dtype=jnp.float32)

    # Deterministic synthetic parameters (PyTorch Linear-style uniform init).
    lim = float(1.0 / (H ** 0.5))
    w1 = jax.random.uniform(k1, (H, H), jnp.float32, -lim, lim)
    b1 = jax.random.uniform(k2, (H,), jnp.float32, -lim, lim)
    gamma = jnp.ones((H,), jnp.float32)   # BatchNorm1d weight
    beta = jnp.zeros((H,), jnp.float32)   # BatchNorm1d bias
    w2 = jax.random.uniform(k3, (H, H), jnp.float32, -lim, lim)
    b2 = jax.random.uniform(k4, (H,), jnp.float32, -lim, lim)
    params = (w1, b1, gamma, beta, w2, b2)

    out = tetra_differences_product(x, params)
    out = jax.block_until_ready(out)

    ref = _reference_forward(x, params)
    assert out.shape == (N, H)
    assert jnp.allclose(out, ref, atol=1e-3, rtol=1e-3), "Pallas kernel mismatch vs reference"

    # TODO(synk): PyTorch train-mode BatchNorm also updates running_mean/var buffers
    # in-place; that stateful side effect does not affect the forward output and is
    # not reproduced here.
    print("KERNEL_OK")
</pallas_src>

<mosaic_0001>
module attributes {stable_mosaic.version = 11 : i64} {
  func.func @tetra_kernel(%arg0: memref<4x16x128xf32, #tpu.memory_space<vmem>>, %arg1: memref<128x128xf32, #tpu.memory_space<vmem>>, %arg2: memref<128x128xf32, #tpu.memory_space<vmem>>, %arg3: memref<4x128xf32, #tpu.memory_space<vmem>>, %arg4: memref<16x128xf32, #tpu.memory_space<vmem>>) attributes {dimension_semantics = [], scalar_prefetch = 0 : i64, scratch_operands = 0 : i64, tpu.core_type = #tpu.core_type<tc>} {
    %c0 = arith.constant 0 : index
    %c0_0 = arith.constant 0 : index
    %c0_1 = arith.constant 0 : index
    %0 = vector.load %arg0[%c0, %c0_0, %c0_1] : memref<4x16x128xf32, #tpu.memory_space<vmem>>, vector<1x16x128xf32>
    %1 = vector.shape_cast %0 : vector<1x16x128xf32> to vector<16x128xf32>
    %c1 = arith.constant 1 : index
    %c0_2 = arith.constant 0 : index
    %c0_3 = arith.constant 0 : index
    %2 = vector.load %arg0[%c1, %c0_2, %c0_3] : memref<4x16x128xf32, #tpu.memory_space<vmem>>, vector<1x16x128xf32>
    %3 = vector.shape_cast %2 : vector<1x16x128xf32> to vector<16x128xf32>
    %c2 = arith.constant 2 : index
    %c0_4 = arith.constant 0 : index
    %c0_5 = arith.constant 0 : index
    %4 = vector.load %arg0[%c2, %c0_4, %c0_5] : memref<4x16x128xf32, #tpu.memory_space<vmem>>, vector<1x16x128xf32>
    %5 = vector.shape_cast %4 : vector<1x16x128xf32> to vector<16x128xf32>
    %c3 = arith.constant 3 : index
    %c0_6 = arith.constant 0 : index
    %c0_7 = arith.constant 0 : index
    %6 = vector.load %arg0[%c3, %c0_6, %c0_7] : memref<4x16x128xf32, #tpu.memory_space<vmem>>, vector<1x16x128xf32>
    %7 = vector.shape_cast %6 : vector<1x16x128xf32> to vector<16x128xf32>
    %8 = arith.subf %1, %3 : vector<16x128xf32>
    %9 = arith.subf %1, %5 : vector<16x128xf32>
    %10 = arith.mulf %8, %9 : vector<16x128xf32>
    %11 = arith.subf %1, %7 : vector<16x128xf32>
    %12 = arith.mulf %10, %11 : vector<16x128xf32>
    %13 = arith.subf %3, %5 : vector<16x128xf32>
    %14 = arith.mulf %12, %13 : vector<16x128xf32>
    %15 = arith.subf %3, %7 : vector<16x128xf32>
    %16 = arith.mulf %14, %15 : vector<16x128xf32>
    %17 = arith.subf %5, %7 : vector<16x128xf32>
    %18 = arith.mulf %16, %17 : vector<16x128xf32>
    %19 = math.absf %18 : vector<16x128xf32>
    %cst = arith.constant 9.99999997E-7 : f32
    %20 = vector.broadcast %cst : f32 to vector<16x128xf32>
    %21 = arith.addf %19, %20 : vector<16x128xf32>
    %22 = math.log %21 : vector<16x128xf32>
    %cst_8 = arith.constant 0.166666672 : f32
    %23 = vector.broadcast %cst_8 : f32 to vector<16x128xf32>
    %24 = arith.mulf %22, %23 : vector<16x128xf32>
    %25 = math.exp %24 : vector<16x128xf32>
    %cst_9 = arith.constant 0.000000e+00 : f32
    %26 = vector.broadcast %cst_9 : f32 to vector<16x128xf32>
    %27 = arith.cmpf oeq, %18, %26 : vector<16x128xf32>
    %cst_10 = arith.constant 0.000000e+00 : f32
    %28 = vector.broadcast %cst_10 : f32 to vector<16x128xf32>
    %29 = arith.cmpf oge, %18, %28 : vector<16x128xf32>
    %cst_11 = arith.constant 0.000000e+00 : f32
    %30 = vector.broadcast %cst_11 : f32 to vector<16x128xf32>
    %31 = arith.subf %30, %25 : vector<16x128xf32>
    %32 = arith.select %29, %25, %31 : vector<16x128xi1>, vector<16x128xf32>
    %cst_12 = arith.constant 0.000000e+00 : f32
    %33 = vector.broadcast %cst_12 : f32 to vector<16x128xf32>
    %34 = arith.select %27, %33, %32 : vector<16x128xi1>, vector<16x128xf32>
    %c0_13 = arith.constant 0 : index
    %c0_14 = arith.constant 0 : index
    %35 = vector.load %arg3[%c0_13, %c0_14] : memref<4x128xf32, #tpu.memory_space<vmem>>, vector<1x128xf32>
    %c1_15 = arith.constant 1 : index
    %c0_16 = arith.constant 0 : index
    %36 = vector.load %arg3[%c1_15, %c0_16] : memref<4x128xf32, #tpu.memory_space<vmem>>, vector<1x128xf32>
    %c2_17 = arith.constant 2 : index
    %c0_18 = arith.constant 0 : index
    %37 = vector.load %arg3[%c2_17, %c0_18] : memref<4x128xf32, #tpu.memory_space<vmem>>, vector<1x128xf32>
    %c3_19 = arith.constant 3 : index
    %c0_20 = arith.constant 0 : index
    %38 = vector.load %arg3[%c3_19, %c0_20] : memref<4x128xf32, #tpu.memory_space<vmem>>, vector<1x128xf32>
    %c0_21 = arith.constant 0 : index
    %c0_22 = arith.constant 0 : index
    %39 = vector.load %arg1[%c0_21, %c0_22] : memref<128x128xf32, #tpu.memory_space<vmem>>, vector<128x128xf32>
    %cst_23 = arith.constant dense<0.000000e+00> : vector<16x128xf32>
    %40 = tpu.matmul %34, %39, %cst_23 {dimension_numbers = #tpu.dot_dimension_numbers<[1], [0], [0], [1], [0, 0, 1, 1], [], []>} : vector<16x128xf32>, vector<128x128xf32>, vector<16x128xf32> -> vector<16x128xf32>
    %41 = vector.broadcast %35 : vector<1x128xf32> to vector<16x128xf32>
    %42 = arith.addf %40, %41 : vector<16x128xf32>
    %cst_24 = arith.constant dense<0.000000e+00> : vector<128xf32>
    %43 = vector.multi_reduction <add>, %42, %cst_24 [0] : vector<16x128xf32> to vector<128xf32>
    %44 = vector.shape_cast %43 : vector<128xf32> to vector<1x128xf32>
    %cst_25 = arith.constant 1.600000e+01 : f32
    %45 = vector.broadcast %cst_25 : f32 to vector<1x128xf32>
    %46 = arith.divf %44, %45 : vector<1x128xf32>
    %47 = vector.broadcast %46 : vector<1x128xf32> to vector<16x128xf32>
    %48 = arith.subf %42, %47 : vector<16x128xf32>
    %49 = arith.mulf %48, %48 : vector<16x128xf32>
    %cst_26 = arith.constant dense<0.000000e+00> : vector<128xf32>
    %50 = vector.multi_reduction <add>, %49, %cst_26 [0] : vector<16x128xf32> to vector<128xf32>
    %51 = vector.shape_cast %50 : vector<128xf32> to vector<1x128xf32>
    %cst_27 = arith.constant 1.600000e+01 : f32
    %52 = vector.broadcast %cst_27 : f32 to vector<1x128xf32>
    %53 = arith.divf %51, %52 : vector<1x128xf32>
    %54 = vector.broadcast %46 : vector<1x128xf32> to vector<16x128xf32>
    %55 = arith.subf %42, %54 : vector<16x128xf32>
    %cst_28 = arith.constant 9.99999974E-6 : f32
    %56 = vector.broadcast %cst_28 : f32 to vector<1x128xf32>
    %57 = arith.addf %53, %56 : vector<1x128xf32>
    %58 = math.rsqrt %57 : vector<1x128xf32>
    %59 = vector.broadcast %58 : vector<1x128xf32> to vector<16x128xf32>
    %60 = arith.mulf %55, %59 : vector<16x128xf32>
    %61 = vector.broadcast %36 : vector<1x128xf32> to vector<16x128xf32>
    %62 = arith.mulf %60, %61 : vector<16x128xf32>
    %63 = vector.broadcast %37 : vector<1x128xf32> to vector<16x128xf32>
    %64 = arith.addf %62, %63 : vector<16x128xf32>
    %cst_29 = arith.constant 0.000000e+00 : f32
    %65 = vector.broadcast %cst_29 : f32 to vector<16x128xf32>
    %66 = arith.maximumf %64, %65 : vector<16x128xf32>
    %c0_30 = arith.constant 0 : index
    %c0_31 = arith.constant 0 : index
    %67 = vector.load %arg2[%c0_30, %c0_31] : memref<128x128xf32, #tpu.memory_space<vmem>>, vector<128x128xf32>
    %cst_32 = arith.constant dense<0.000000e+00> : vector<16x128xf32>
    %68 = tpu.matmul %66, %67, %cst_32 {dimension_numbers = #tpu.dot_dimension_numbers<[1], [0], [0], [1], [0, 0, 1, 1], [], []>} : vector<16x128xf32>, vector<128x128xf32>, vector<16x128xf32> -> vector<16x128xf32>
    %69 = vector.broadcast %38 : vector<1x128xf32> to vector<16x128xf32>
    %70 = arith.addf %68, %69 : vector<16x128xf32>
    %c0_33 = arith.constant 0 : index
    %c0_34 = arith.constant 0 : index
    %71 = vector.load %arg4[%c0_33, %c0_34] : memref<16x128xf32, #tpu.memory_space<vmem>>, vector<16x128xf32>
    tpu.vector_store %arg4[%c0_33, %c0_34], %70 {strides = array<i32>} : memref<16x128xf32, #tpu.memory_space<vmem>>, vector<16x128xf32>,
    return
  }
}

</mosaic_0001>

<llo_original>
// kernel: tpu_custom_call.1
$region0: #{tpu_custom_call.1}
  #allocation0 [shape = 'u32[]', space=smem, size = 0x4, offset = 0x4, fixed_abs, tag = 'smem constant byte address 0x4 - core index']
  #allocation1 [shape = 'u32[72,128]{1,0:T(1,128)}', space=vmem, size = 0x9000, scoped, tag = 'internal scratch']
  %s0 = inlined_call_operand.hbm [shape: f32[4,16,128], index: 0, kind: input, shape index: {}]
  %s1 = inlined_call_operand.hbm [shape: f32[128,128], index: 1, kind: input, shape index: {}]
  %s2 = inlined_call_operand.hbm [shape: f32[128,128], index: 2, kind: input, shape index: {}]
  %s3 = inlined_call_operand.hbm [shape: f32[4,128], index: 3, kind: input, shape index: {}]
  %s4 = inlined_call_operand.hbm [shape: f32[16,128], index: 4, kind: output, shape index: {}]
  %s5 = sld [smem:[#allocation0]]
  $region42: #{tpu_custom_call.1} parent=0
    _
  %s7 = ssub.s32 1, %s5
  %s8 = scalar_select 0, %s7, %s5
  $region1: #{tpu_custom_call.1} parent=0
    #allocation2 [shape = 'u8[32768]{0}', space=vmem, size = 0x8000, scoped, tag = 'input window, operand 0, single buffered']
    #allocation3 [shape = 's32[1]{0}', space=sflag, size = 0x4, scoped, tag = 'scoped memory for tpu_custom_call.1']
    #allocation4 [shape = 's32[1]{0}', space=sflag, size = 0x4, scoped, tag = 'scoped memory for tpu_custom_call.1']
    #allocation5 [shape = 'u8[65536]{0}', space=vmem, size = 0x10000, scoped, tag = 'input window, operand 1, single buffered']
    #allocation6 [shape = 's32[1]{0}', space=sflag, size = 0x4, scoped, tag = 'scoped memory for tpu_custom_call.1']
    #allocation7 [shape = 'u8[65536]{0}', space=vmem, size = 0x10000, scoped, tag = 'input window, operand 2, single buffered']
    #allocation8 [shape = 'u8[2048]{0}', space=vmem, size = 0x800, scoped, tag = 'input window, operand 3, single buffered']
    #allocation9 [shape = 's32[1]{0}', space=sflag, size = 0x4, scoped, tag = 'scoped memory for tpu_custom_call.1']
    #allocation10 [shape = 'u8[8192]{0}', space=vmem, size = 0x2000, scoped, tag = 'output window, operand 0, single buffered']
    %9 = vsyncpa [#allocation3], 0
    %10 = vsyncpa [#allocation6], 0
    %11 = vsyncpa [#allocation9], 0
    %12 = vsyncpa [#allocation4], 0
    // Predicated region
    $region2: #{tpu_custom_call.1} parent=1 // pred_check
      _
    $region3: #{tpu_custom_call.1} parent=1 // pred_check_branch
      %14 = sbr.rel (0) target = $region5
    $region4: #{tpu_custom_call.1} parent=1 // pred_region
      %16 = vsyncadd [#allocation3], 0
      %s17 = sshll.u32 %s0, 4
      %s18 = int_to_ptr.hbm [resolvable:$true] %s17
      %s19 = sshll.u32 [#allocation2], 4
      %s20 = int_to_ptr.vmem [resolvable:$true] %s19
      %25 = dma.hbm_to_vmem [thread:$0]  %s18, 1024, %s20, [#allocation3], 128, 128, 8
    $region5: #{tpu_custom_call.1} parent=1 // pred_fallthru
      _
    // Predicated region
    $region6: #{tpu_custom_call.1} parent=1 // pred_check
      _
    $region7: #{tpu_custom_call.1} parent=1 // pred_check_branch
      %27 = sbr.rel (0) target = $region9
    $region8: #{tpu_custom_call.1} parent=1 // pred_region
      %29 = vsyncadd [#allocation6], 0
      %s30 = sshll.u32 %s1, 4
      %s31 = int_to_ptr.hbm [resolvable:$true] %s30
      %s32 = sshll.u32 [#allocation5], 4
      %s33 = int_to_ptr.vmem [resolvable:$true] %s32
      %38 = dma.hbm_to_vmem [thread:$0]  %s31, 2048, %s33, [#allocation6], 128, 128, 8
    $region9: #{tpu_custom_call.1} parent=1 // pred_fallthru
      _
    // Predicated region
    $region10: #{tpu_custom_call.1} parent=1 // pred_check
      _
    $region11: #{tpu_custom_call.1} parent=1 // pred_check_branch
      %40 = sbr.rel (0) target = $region13
    $region12: #{tpu_custom_call.1} parent=1 // pred_region
      %42 = vsyncadd [#allocation6], 0
      %s43 = sshll.u32 %s2, 4
      %s44 = int_to_ptr.hbm [resolvable:$true] %s43
      %s45 = sshll.u32 [#allocation7], 4
      %s46 = int_to_ptr.vmem [resolvable:$true] %s45
      %51 = dma.hbm_to_vmem [thread:$0]  %s44, 2048, %s46, [#allocation6], 128, 128, 8
    $region13: #{tpu_custom_call.1} parent=1 // pred_fallthru
      _
    // Predicated region
    $region14: #{tpu_custom_call.1} parent=1 // pred_check
      _
    $region15: #{tpu_custom_call.1} parent=1 // pred_check_branch
      %53 = sbr.rel (0) target = $region17
    $region16: #{tpu_custom_call.1} parent=1 // pred_region
      %55 = vsyncadd [#allocation9], 0
      %s57 = sshll.u32 %s3, 4
      %s58 = int_to_ptr.hbm [resolvable:$true] %s57
      %s59 = sshll.u32 [#allocation8], 4
      %s60 = int_to_ptr.vmem [resolvable:$true] %s59
      %62 = dma.hbm_to_vmem [thread:$0]  %s58, 64, %s60, [#allocation9]
    $region17: #{tpu_custom_call.1} parent=1 // pred_fallthru
      _
    // Predicated region
    $region18: #{tpu_custom_call.1} parent=1 // pred_check
      _
    $region19: #{tpu_custom_call.1} parent=1 // pred_check_branch
      %64 = sbr.rel (0) target = $region21
    $region20: #{tpu_custom_call.1} parent=1 // pred_region
      %66 = dma.done [#allocation3], 1024
    $region21: #{tpu_custom_call.1} parent=1 // pred_fallthru
      _
    // Predicated region
    $region22: #{tpu_custom_call.1} parent=1 // pred_check
      _
    $region23: #{tpu_custom_call.1} parent=1 // pred_check_branch
      %68 = sbr.rel (0) target = $region25
    $region24: #{tpu_custom_call.1} parent=1 // pred_region
      %70 = dma.done [#allocation6], 2048
    $region25: #{tpu_custom_call.1} parent=1 // pred_fallthru
      _
    // Predicated region
    $region26: #{tpu_custom_call.1} parent=1 // pred_check
      _
    $region27: #{tpu_custom_call.1} parent=1 // pred_check_branch
      %72 = sbr.rel (0) target = $region29
    $region28: #{tpu_custom_call.1} parent=1 // pred_region
      %74 = dma.done [#allocation6], 2048
    $region29: #{tpu_custom_call.1} parent=1 // pred_fallthru
      _
    // Predicated region
    $region30: #{tpu_custom_call.1} parent=1 // pred_check
      _
    $region31: #{tpu_custom_call.1} parent=1 // pred_check_branch
      %76 = sbr.rel (0) target = $region33
    $region32: #{tpu_custom_call.1} parent=1 // pred_region
      %78 = dma.done [#allocation9], 64
    $region33: #{tpu_custom_call.1} parent=1 // pred_fallthru
      _
    %v79 = vld [vmem:[#allocation2] sm:$0xff]
    %v80 = vld [vmem:[#allocation2 + $0x8] sm:$0xff]
    %s81 = scalar_lea.vmem [#allocation2], 16
    %v82 = vld [vmem:[%s81] sm:$0xff]
    %v83 = vld [vmem:[%s81 + $0x8] sm:$0xff]
    %s84 = scalar_lea.vmem [#allocation2], 32
    %v85 = vld [vmem:[%s84] sm:$0xff]
    %v86 = vld [vmem:[%s84 + $0x8] sm:$0xff]
    %s87 = scalar_lea.vmem [#allocation2], 48
    %v88 = vld [vmem:[%s87] sm:$0xff]
    %v89 = vld [vmem:[%s87 + $0x8] sm:$0xff]
    %v90 = vsub.f32 %v79, %v82
    %v91 = vsub.f32 %v80, %v83
    %v92 = vsub.f32 %v79, %v85
    %v93 = vsub.f32 %v80, %v86
    %v94 = vmul.f32 %v90, %v92
    %v95 = vmul.f32 %v91, %v93
    %v96 = vsub.f32 %v79, %v88
    %v97 = vsub.f32 %v80, %v89
    %v98 = vmul.f32 %v94, %v96
    %v99 = vmul.f32 %v95, %v97
    %v100 = vsub.f32 %v82, %v85
    %v101 = vsub.f32 %v83, %v86
    %v102 = vmul.f32 %v98, %v100
    %v103 = vmul.f32 %v99, %v101
    %v104 = vsub.f32 %v82, %v88
    %v105 = vsub.f32 %v83, %v89
    %v106 = vmul.f32 %v102, %v104
    %v107 = vmul.f32 %v103, %v105
    %v108 = vsub.f32 %v85, %v88
    %v109 = vsub.f32 %v86, %v89
    %v110 = vmul.f32 %v106, %v108
    %v111 = vmul.f32 %v107, %v109
    %v112 = vand.u32 2147483647, %v110
    %v113 = vand.u32 2147483647, %v111
    %v114 = vadd.f32 %v112, 1e-06
    %v115 = vadd.f32 %v113, 1e-06
    %v116 = vlog2.pop %v114
    %v117 = vmul.f32 %v116, 0.6931472
    %v118 = vlog2.pop %v115
    %v119 = vmul.f32 %v118, 0.6931472
    %v120 = vmul.f32 %v117, 0.16666667
    %v121 = vmul.f32 %v119, 0.16666667
    %v122 = vmul.f32 %v120, 1.442695
    %v123 = vpow.pop %v122
    %v124 = vmul.f32 %v121, 1.442695
    %v125 = vpow.pop %v124
    %vm126 = vcmp.eq.f32.partialorder %v110, 0.0
    %vm127 = vcmp.eq.f32.partialorder %v111, 0.0
    %vm128 = vcmp.ge.f32.partialorder %v110, 0.0
    %vm129 = vcmp.ge.f32.partialorder %v111, 0.0
    %v130 = vsub.f32 0.0, %v123
    %v131 = vsub.f32 0.0, %v125
    %v132 = vsel %vm128, %v123, %v130
    %v133 = vsel %vm129, %v125, %v131
    %v134 = vsel %vm126, 0.0, %v132
    %v135 = vsel %vm127, 0.0, %v133
    %v136 = vld [vmem:[#allocation8] sm:$0x1]
    %v137 = vld [vmem:[#allocation8 + $0x1] sm:$0x1]
    %v138 = vld [vmem:[#allocation8 + $0x2] sm:$0x1]
    %v139 = vld [vmem:[#allocation8 + $0x3] sm:$0x1]
    %v140 = vld [vmem:[#allocation5] sm:$0xff]
    %v141 = vld [vmem:[#allocation5 + $0x8] sm:$0xff]
    %v142 = vld [vmem:[#allocation5 + $0x10] sm:$0xff]
    %v143 = vld [vmem:[#allocation5 + $0x18] sm:$0xff]
    %v144 = vld [vmem:[#allocation5 + $0x20] sm:$0xff]
    %v145 = vld [vmem:[#allocation5 + $0x28] sm:$0xff]
    %v146 = vld [vmem:[#allocation5 + $0x30] sm:$0xff]
    %v147 = vld [vmem:[#allocation5 + $0x38] sm:$0xff]
    %v148 = vld [vmem:[#allocation5 + $0x40] sm:$0xff]
    %v149 = vld [vmem:[#allocation5 + $0x48] sm:$0xff]
    %v150 = vld [vmem:[#allocation5 + $0x50] sm:$0xff]
    %v151 = vld [vmem:[#allocation5 + $0x58] sm:$0xff]
    %v152 = vld [vmem:[#allocation5 + $0x60] sm:$0xff]
    %v153 = vld [vmem:[#allocation5 + $0x68] sm:$0xff]
    %v154 = vld [vmem:[#allocation5 + $0x70] sm:$0xff]
    %v155 = vld [vmem:[#allocation5 + $0x78] sm:$0xff]
    %v156 = vperm.slane %v136, 0
    %157 = vmatpush.msra.mxu0 %v155
    %158 = vmatpush.msra.mxu0 %v154
    %159 = vmatpush.msra.mxu0 %v153
    %160 = vmatpush.msra.mxu0 %v152
    %161 = vmatpush.msra.mxu0 %v151
    %162 = vmatpush.msra.mxu0 %v150
    %163 = vmatpush.msra.mxu0 %v149
    %164 = vmatpush.msra.mxu0 %v148
    %165 = vmatpush.msra.mxu0 %v147
    %166 = vmatpush.msra.mxu0 %v146
    %167 = vmatpush.msra.mxu0 %v145
    %168 = vmatpush.msra.mxu0 %v144
    %169 = vmatpush.msra.mxu0 %v143
    %170 = vmatpush.msra.mxu0 %v142
    %171 = vmatpush.msra.mxu0 %v141
    %172 = vmatpush.msra.mxu0 %v140
    %173 = vmatmul.f32.gmra.mxu0 %v134
    %v174 = vpop.f32.mrf.mxu0
    %v175 = vadd.f32 %v156, %v174
    %176 = vmatmul.f32.gmra.mxu0 %v135
    %v177 = vpop.f32.mrf.mxu0
    %v178 = vadd.f32 %v156, %v177
    %179 = vdwg.mxu0
    %v180 = vadd.f32 %v175, %v178
    %v181 = vrot.slane %v180, 4
    %v182 = vadd.f32 %v180, %v181
    %v183 = vrot.slane %v182, 2
    %v184 = vadd.f32 %v182, %v183
    %v185 = vrot.slane %v184, 1
    %v186 = vadd.f32 %v184, %v185
    %v187 = vrcp.pop 16.0
    %v188 = vmul.f32 16.0, %v187
    %v189 = vsub.f32 1.0, %v188
    %v190 = vmul.f32 %v187, %v189
    %v191 = vadd.f32 %v187, %v190
    %vm192 = vweird.f32 %v187
    %v193 = vsel %vm192, %v187, %v191
    %v194 = vmul.f32 %v186, %v193
    %v195 = vsub.f32 %v175, %v194
    %v196 = vsub.f32 %v178, %v194
    %v197 = vmul.f32 %v195, %v195
    %v198 = vmul.f32 %v196, %v196
    %v199 = vadd.f32 %v197, %v198
    %v200 = vrot.slane %v199, 4
    %v201 = vadd.f32 %v199, %v200
    %v202 = vrot.slane %v201, 2
    %v203 = vadd.f32 %v201, %v202
    %v204 = vrot.slane %v203, 1
    %v205 = vadd.f32 %v203, %v204
    %v206 = vmul.f32 %v205, %v193
    %v207 = vadd.f32 %v206, 1e-05
    %v208 = vrsqrt.pop %v207
    %v209 = vmul.f32 %v208, %v207
    %v210 = vmul.f32 %v209, %v208
    %v211 = vmul.f32 0.5, %v210
    %v212 = vsub.f32 1.5, %v211
    %v213 = vmul.f32 %v208, %v212
    %vm214 = vweird.f32 %v207
    %vm215 = vweird.f32 %v208
    %vm216 = vmor %vm214, %vm215
    %v217 = vsel %vm216, %v208, %v213
    %v218 = vmul.f32 %v195, %v217
    %v219 = vmul.f32 %v196, %v217
    %v220 = vperm.slane %v137, 0
    %v221 = vmul.f32 %v218, %v220
    %v222 = vmul.f32 %v219, %v220
    %v223 = vperm.slane %v138, 0
    %v224 = vadd.f32 %v221, %v223
    %v225 = vadd.f32 %v222, %v223
    %v226 = vmax.f32 %v224, 0.0
    %v227 = vmax.f32 %v225, 0.0
    %v228 = vld [vmem:[#allocation7] sm:$0xff]
    %v229 = vld [vmem:[#allocation7 + $0x8] sm:$0xff]
    %v230 = vld [vmem:[#allocation7 + $0x10] sm:$0xff]
    %v231 = vld [vmem:[#allocation7 + $0x18] sm:$0xff]
    %v232 = vld [vmem:[#allocation7 + $0x20] sm:$0xff]
    %v233 = vld [vmem:[#allocation7 + $0x28] sm:$0xff]
    %v234 = vld [vmem:[#allocation7 + $0x30] sm:$0xff]
    %v235 = vld [vmem:[#allocation7 + $0x38] sm:$0xff]
    %v236 = vld [vmem:[#allocation7 + $0x40] sm:$0xff]
    %v237 = vld [vmem:[#allocation7 + $0x48] sm:$0xff]
    %v238 = vld [vmem:[#allocation7 + $0x50] sm:$0xff]
    %v239 = vld [vmem:[#allocation7 + $0x58] sm:$0xff]
    %v240 = vld [vmem:[#allocation7 + $0x60] sm:$0xff]
    %v241 = vld [vmem:[#allocation7 + $0x68] sm:$0xff]
    %v242 = vld [vmem:[#allocation7 + $0x70] sm:$0xff]
    %v243 = vld [vmem:[#allocation7 + $0x78] sm:$0xff]
    %v244 = vperm.slane %v139, 0
    %245 = vmatpush.msra.mxu0 %v243
    %246 = vmatpush.msra.mxu0 %v242
    %247 = vmatpush.msra.mxu0 %v241
    %248 = vmatpush.msra.mxu0 %v240
    %249 = vmatpush.msra.mxu0 %v239
    %250 = vmatpush.msra.mxu0 %v238
    %251 = vmatpush.msra.mxu0 %v237
    %252 = vmatpush.msra.mxu0 %v236
    %253 = vmatpush.msra.mxu0 %v235
    %254 = vmatpush.msra.mxu0 %v234
    %255 = vmatpush.msra.mxu0 %v233
    %256 = vmatpush.msra.mxu0 %v232
    %257 = vmatpush.msra.mxu0 %v231
    %258 = vmatpush.msra.mxu0 %v230
    %259 = vmatpush.msra.mxu0 %v229
    %260 = vmatpush.msra.mxu0 %v228
    %261 = vmatmul.f32.gmra.mxu0 %v226
    %v262 = vpop.f32.mrf.mxu0
    %v263 = vadd.f32 %v244, %v262
    %264 = vmatmul.f32.gmra.mxu0 %v227
    %v265 = vpop.f32.mrf.mxu0
    %v266 = vadd.f32 %v244, %v265
    %267 = vdwg.mxu0
    %268 = vst [vmem:[#allocation10] sm:$0xff] %v263
    %269 = vst [vmem:[#allocation10 + $0x8] sm:$0xff] %v266
    // Predicated region
    $region34: #{tpu_custom_call.1} parent=1 // pred_check
      _
    $region35: #{tpu_custom_call.1} parent=1 // pred_check_branch
      %271 = sbr.rel (0) target = $region37
    $region36: #{tpu_custom_call.1} parent=1 // pred_region
      %273 = vsyncadd [#allocation4], 0
      %s274 = sshll.u32 [#allocation10], 4
      %s275 = int_to_ptr.vmem [resolvable:$true] %s274
      %s276 = sshll.u32 %s4, 4
      %s277 = int_to_ptr.hbm [resolvable:$true] %s276
      %282 = dma.vmem_to_hbm [thread:$0]  %s275, 256, %s277, [#allocation4], 128, 128, 8
    $region37: #{tpu_custom_call.1} parent=1 // pred_fallthru
      _
    // Predicated region
    $region38: #{tpu_custom_call.1} parent=1 // pred_check
      _
    $region39: #{tpu_custom_call.1} parent=1 // pred_check_branch
      %284 = sbr.rel (0) target = $region41
    $region40: #{tpu_custom_call.1} parent=1 // pred_region
      %286 = dma.done [#allocation4], 256
    $region41: #{tpu_custom_call.1} parent=1 // pred_fallthru
      _
    %287 = vsyncpa [#allocation3], 1
    %288 = vsyncpa [#allocation6], 1
    %289 = vsyncpa [#allocation9], 1
    %290 = vsyncpa [#allocation4], 1

</llo_original>
